<compile_context>
chip_gen: v7x
topology: tpu7x:2x2x1
jax: 0.10.0
libtpu: 0.0.40
codegen_flags: <defaults>
</compile_context>

<pallas_src>
import functools

import jax
import jax.numpy as jnp
from jax.experimental import pallas as pl
from jax.experimental.pallas import tpu as pltpu


def _patch_embed_kernel(x_ref, w_ref, b_ref, o_ref):
    # x_ref: (tm, K_pad) streamed patch-feature tile.
    # w_ref: (K_pad, E_pad) projection matrix (grid-invariant, VMEM resident).
    # b_ref: (1, E_pad) f32 bias (grid-invariant).
    acc = jnp.dot(x_ref[...], w_ref[...], preferred_element_type=jnp.float32)
    o_ref[...] = (acc + b_ref[...]).astype(o_ref.dtype)


def _round_up(a, b):
    return ((a + b - 1) // b) * b


@functools.partial(jax.jit, static_argnames=("patch_size", "compute_dtype"))
def patch_embed(x, weight, bias, *, patch_size, compute_dtype=None):
    """x: (B, C, H, W) NCHW.  weight: (E, C, p, p) (PyTorch Conv2d layout).
    bias: (E,).  Returns (B, num_patches, E) == proj(x).flatten(2).transpose(1,2).
    norm_layer=None in the reference module -> Identity (no-op)."""
    B, C, H, W = x.shape
    E = weight.shape[0]
    p = patch_size
    assert H % p == 0 and W % p == 0
    Gh, Gw = H // p, W // p
    num_patches = Gh * Gw

    out_dtype = x.dtype
    mm_dtype = (jnp.dtype(compute_dtype) if compute_dtype is not None
                else jnp.dtype(x.dtype))

    K = C * p * p
    M = B * num_patches

    # Lane-dense padding (128 lanes).  Zero-padding K is numerically exact;
    # the E padding is sliced off at the end.
    K_pad = _round_up(K, 128)
    E_pad = _round_up(E, 128)

    # ---- glue: non-overlapping patch extraction; per-patch feature order is
    # (C, ph, pw) to match PyTorch conv-weight flattening.  One fused
    # transpose/reshape/cast/pad producer writes patches contiguously once.
    xp = x.reshape(B, C, Gh, p, Gw, p)
    xp = jnp.transpose(xp, (0, 2, 4, 1, 3, 5))          # (B, Gh, Gw, C, p, p)
    patches = xp.reshape(M, K).astype(mm_dtype)
    if K_pad != K:
        patches = jnp.pad(patches, ((0, 0), (0, K_pad - K)))

    # ---- glue: conv weight -> dense projection matrix (tiny, O(K*E)).
    w_mat = weight.reshape(E, K).T.astype(mm_dtype)     # (K, E)
    w_mat = jnp.pad(w_mat, ((0, K_pad - K), (0, E_pad - E)))
    b_mat = jnp.pad(bias.reshape(1, E).astype(jnp.float32),
                    ((0, 0), (0, E_pad - E)))           # (1, E_pad) f32

    mm_bytes = mm_dtype.itemsize
    out_bytes = jnp.dtype(out_dtype).itemsize
    sublane = 16 if mm_bytes == 2 else 8                # bf16 packs 16 sublanes

    def _footprint(t):
        # Double-buffered streamed input + output tiles; grid-invariant
        # weight / bias counted once (constant block index -> fetched once).
        return (2 * t * (K_pad * mm_bytes + E_pad * out_bytes)
                + K_pad * E_pad * mm_bytes + E_pad * 4)

    # ---- generation-aware VMEM budget (v7x: 64 MiB/TC; v5e/v6e: 128 MiB).
    try:
        vmem_cap = int(getattr(pltpu.get_tpu_info(), "vmem_capacity_bytes",
                               64 << 20))
    except Exception:
        vmem_cap = 64 << 20                             # conservative fallback
    if vmem_cap <= (64 << 20):
        budget, limit_cap = 24 << 20, 40 << 20          # v7x: leave headroom
    else:
        budget, limit_cap = 56 << 20, 96 << 20          # v5e / v6e

    # ---- row-tile selection: big tiles amortize the ~0.35us/step pipeline
    # overhead; but keep >=4 grid steps for moderate/large M so both v7x
    # TensorCores get work and DMA/compute actually overlap.
    tm = 512
    while tm > sublane and _footprint(tm) > budget:
        tm //= 2
    if M >= 4 * 128:
        tm = min(tm, _round_up(-(-M // 4), sublane))
    tm = max(sublane, min(tm, _round_up(M, sublane)))

    grid_m = pl.cdiv(M, tm)   # no M padding: Pallas masks the partial tail block
    vmem_limit = int(min(max(_footprint(tm) + (8 << 20), 16 << 20), limit_cap))

    out = pl.pallas_call(
        _patch_embed_kernel,
        out_shape=jax.ShapeDtypeStruct((M, E_pad), out_dtype),
        grid=(grid_m,),
        in_specs=[
            pl.BlockSpec((tm, K_pad), lambda i: (i, 0)),       # streamed
            pl.BlockSpec((K_pad, E_pad), lambda i: (0, 0)),    # resident weight
            pl.BlockSpec((1, E_pad), lambda i: (0, 0)),        # resident bias
        ],
        out_specs=pl.BlockSpec((tm, E_pad), lambda i: (i, 0)),
        compiler_params=pltpu.CompilerParams(
            dimension_semantics=("parallel",),    # shards rows over 2 TCs on v7x
            vmem_limit_bytes=vmem_limit,
        ),
    )(patches, w_mat, b_mat)

    out = out[:, :E]                               # drop E padding only
    return out.reshape(B, num_patches, E)


def _reference(x, weight, bias, patch_size):
    """Pure-JAX reference matching torch.nn.Conv2d(stride=kernel=patch)."""
    y = jax.lax.conv_general_dilated(
        x, weight,
        window_strides=(patch_size, patch_size),
        padding="VALID",
        dimension_numbers=("NCHW", "OIHW", "NCHW"),
    ) + bias[None, :, None, None]
    B, E, Gh, Gw = y.shape
    return jnp.transpose(y.reshape(B, E, Gh * Gw), (0, 2, 1))


if __name__ == "__main__":
    # Small shapes consistent with the module: img 16x16, patch 4, C=4, E=32.
    B, C, H, W = 2, 4, 16, 16
    patch_size = 4
    embed_dim = 32

    key = jax.random.PRNGKey(0)
    kx, kw, kb = jax.random.split(key, 3)
    x = jax.random.normal(kx, (B, C, H, W), dtype=jnp.float32)
    # Deterministic synthetic params (Conv2d weight layout: (E, C, p, p)).
    weight = jax.random.normal(kw, (embed_dim, C, patch_size, patch_size),
                               dtype=jnp.float32) * 0.02
    bias = jax.random.normal(kb, (embed_dim,), dtype=jnp.float32) * 0.02

    ref = _reference(x, weight, bias, patch_size)

    # Exact f32 path (bit-for-bit semantics of the PyTorch module's conv).
    out = patch_embed(x, weight, bias, patch_size=patch_size)
    out = jax.block_until_ready(out)
    assert out.shape == (B, (H // patch_size) * (W // patch_size), embed_dim)
    assert jnp.allclose(out, ref, atol=1e-5, rtol=1e-5)

    # Recommended production path: bf16 streamed operands, f32 accumulation.
    out_bf16 = patch_embed(x, weight, bias, patch_size=patch_size,
                           compute_dtype=jnp.bfloat16)
    out_bf16 = jax.block_until_ready(out_bf16)
    assert jnp.allclose(out_bf16.astype(jnp.float32), ref, atol=5e-2, rtol=5e-2)

    print("KERNEL_OK")
</pallas_src>

<mosaic_0001>
module attributes {stable_mosaic.version = 11 : i64} {
  func.func @_patch_embed_kernel(%arg0: i32, %arg1: memref<32x128xf32, #tpu.memory_space<vmem>>, %arg2: memref<128x128xf32, #tpu.memory_space<vmem>>, %arg3: memref<1x128xf32, #tpu.memory_space<vmem>>, %arg4: memref<32x128xf32, #tpu.memory_space<vmem>>) attributes {dimension_semantics = [#tpu.dimension_semantics<parallel>], iteration_bounds = array<i64: 1>, scalar_prefetch = 0 : i64, scratch_operands = 0 : i64, tpu.core_type = #tpu.core_type<tc>, window_params = [{transform_indices = @transform_0, window_bounds = array<i64: 32, 128>}, {pipeline_mode = #tpu.pipeline_mode<synchronous>, transform_indices = @transform_1, window_bounds = array<i64: 128, 128>}, {pipeline_mode = #tpu.pipeline_mode<synchronous>, transform_indices = @transform_2, window_bounds = array<i64: 1, 128>}, {transform_indices = @transform_3, window_bounds = array<i64: 32, 128>}]} {
    %c0 = arith.constant 0 : index
    %c0_0 = arith.constant 0 : index
    %0 = vector.load %arg1[%c0, %c0_0] : memref<32x128xf32, #tpu.memory_space<vmem>>, vector<32x128xf32>
    %c0_1 = arith.constant 0 : index
    %c0_2 = arith.constant 0 : index
    %1 = vector.load %arg2[%c0_1, %c0_2] : memref<128x128xf32, #tpu.memory_space<vmem>>, vector<128x128xf32>
    %cst = arith.constant dense<0.000000e+00> : vector<32x128xf32>
    %2 = tpu.matmul %0, %1, %cst {dimension_numbers = #tpu.dot_dimension_numbers<[1], [0], [0], [1], [0, 0, 1, 1], [], []>} : vector<32x128xf32>, vector<128x128xf32>, vector<32x128xf32> -> vector<32x128xf32>
    %c0_3 = arith.constant 0 : index
    %c0_4 = arith.constant 0 : index
    %3 = vector.load %arg3[%c0_3, %c0_4] : memref<1x128xf32, #tpu.memory_space<vmem>>, vector<1x128xf32>
    %4 = vector.broadcast %3 : vector<1x128xf32> to vector<32x128xf32>
    %5 = arith.addf %2, %4 : vector<32x128xf32>
    %c0_5 = arith.constant 0 : index
    %c0_6 = arith.constant 0 : index
    %6 = vector.load %arg4[%c0_5, %c0_6] : memref<32x128xf32, #tpu.memory_space<vmem>>, vector<32x128xf32>
    tpu.vector_store %arg4[%c0_5, %c0_6], %5 {strides = array<i32>} : memref<32x128xf32, #tpu.memory_space<vmem>>, vector<32x128xf32>,
    return
  }
  func.func @transform_0(%arg0: i32) -> (i32, i32) {
    %c0_i32 = arith.constant 0 : i32
    %c0_i32_0 = arith.constant 0 : i32
    return %arg0, %c0_i32 : i32, i32
  }
  func.func @transform_1(%arg0: i32) -> (i32, i32) {
    %c0_i32 = arith.constant 0 : i32
    %c0_i32_0 = arith.constant 0 : i32
    %c0_i32_1 = arith.constant 0 : i32
    return %c0_i32, %c0_i32_0 : i32, i32
  }
  func.func @transform_2(%arg0: i32) -> (i32, i32) {
    %c0_i32 = arith.constant 0 : i32
    %c0_i32_0 = arith.constant 0 : i32
    %c0_i32_1 = arith.constant 0 : i32
    return %c0_i32, %c0_i32_0 : i32, i32
  }
  func.func @transform_3(%arg0: i32) -> (i32, i32) {
    %c0_i32 = arith.constant 0 : i32
    %c0_i32_0 = arith.constant 0 : i32
    return %arg0, %c0_i32 : i32, i32
  }
}

</mosaic_0001>

<llo_original>
// kernel: patch_embed.1
$region0: #{patch_embed.1}
  #allocation0 [shape = 'u32[]', space=smem, size = 0x4, offset = 0x4, fixed_abs, tag = 'smem constant byte address 0x4 - core index']
  #allocation1 [shape = 'u32[144,128]{1,0:T(1,128)}', space=vmem, size = 0x12000, scoped, tag = 'internal scratch']
  %s0 = inlined_call_operand.vmem [shape: f32[32,128], index: 0, kind: input, shape index: {}]
  %s1 = inlined_call_operand.vmem [shape: f32[128,128], index: 1, kind: input, shape index: {}]
  %s2 = inlined_call_operand.vmem [shape: f32[1,128], index: 2, kind: input, shape index: {}]
  %s3 = inlined_call_operand.hbm [shape: f32[32,128], index: 3, kind: output, shape index: {}]
  %s4 = sld [smem:[#allocation0]]
  $region22: #{patch_embed.1} parent=0
    _
  %s6 = ssub.s32 1, %s4
  %s7 = scalar_select 0, %s6, %s4
  $region1: #{patch_embed.1} parent=0
    #allocation2 [shape = 'u8[16384]{0}', space=vmem, size = 0x4000, scoped, tag = 'output window, operand 0, single buffered']
    #allocation3 [shape = 's32[1]{0}', space=sflag, size = 0x4, scoped, tag = 'scoped memory for patch_embed.1']
    %8 = vsyncpa [#allocation3], 0
    // Predicated region
    $region2: #{patch_embed.1} parent=1 // pred_check
      _
    $region3: #{patch_embed.1} parent=1 // pred_check_branch
      %10 = sbr.rel (0) target = $region5
    $region4: #{patch_embed.1} parent=1 // pred_region
      _
    $region5: #{patch_embed.1} parent=1 // pred_fallthru
      _
    // Predicated region
    $region6: #{patch_embed.1} parent=1 // pred_check
      _
    $region7: #{patch_embed.1} parent=1 // pred_check_branch
      %12 = sbr.rel (0) target = $region9
    $region8: #{patch_embed.1} parent=1 // pred_region
      _
    $region9: #{patch_embed.1} parent=1 // pred_fallthru
      _
    // Predicated region
    $region10: #{patch_embed.1} parent=1 // pred_check
      _
    $region11: #{patch_embed.1} parent=1 // pred_check_branch
      %14 = sbr.rel (0) target = $region13
    $region12: #{patch_embed.1} parent=1 // pred_region
      _
    $region13: #{patch_embed.1} parent=1 // pred_fallthru
      _
    %v15 = vld [vmem:[%s0] sm:$0xff]
    %v16 = vld [vmem:[%s0 + $0x8] sm:$0xff]
    %v17 = vld [vmem:[%s0 + $0x10] sm:$0xff]
    %v18 = vld [vmem:[%s0 + $0x18] sm:$0xff]
    %v19 = vld [vmem:[%s1] sm:$0xff]
    %v20 = vld [vmem:[%s1 + $0x8] sm:$0xff]
    %v21 = vld [vmem:[%s1 + $0x10] sm:$0xff]
    %v22 = vld [vmem:[%s1 + $0x18] sm:$0xff]
    %v23 = vld [vmem:[%s1 + $0x20] sm:$0xff]
    %v24 = vld [vmem:[%s1 + $0x28] sm:$0xff]
    %v25 = vld [vmem:[%s1 + $0x30] sm:$0xff]
    %v26 = vld [vmem:[%s1 + $0x38] sm:$0xff]
    %v27 = vld [vmem:[%s1 + $0x40] sm:$0xff]
    %v28 = vld [vmem:[%s1 + $0x48] sm:$0xff]
    %v29 = vld [vmem:[%s1 + $0x50] sm:$0xff]
    %v30 = vld [vmem:[%s1 + $0x58] sm:$0xff]
    %v31 = vld [vmem:[%s1 + $0x60] sm:$0xff]
    %v32 = vld [vmem:[%s1 + $0x68] sm:$0xff]
    %v33 = vld [vmem:[%s1 + $0x70] sm:$0xff]
    %v34 = vld [vmem:[%s1 + $0x78] sm:$0xff]
    %v35 = vld [vmem:[%s2] sm:$0x1]
    %v37 = vlaneseq
    %v38 = vshrl.u32 %v37, 7
    %v39 = vsub.s32 0, %v38
    %v40 = vrot.slane %v35, %v39
    %42 = vmatprep.subr.mxu0 0.0
    %43 = vmatpush1.msra.mxu0 %v19
    %44 = vmatprep.subr.mxu0 0.0
    %45 = vmatpush1.msra.mxu0 %v20
    %46 = vmatprep.subr.mxu0 0.0
    %47 = vmatpush1.msra.mxu0 %v21
    %48 = vmatprep.subr.mxu0 0.0
    %49 = vmatpush1.msra.mxu0 %v22
    %50 = vmatprep.subr.mxu0 0.0
    %51 = vmatpush1.msra.mxu0 %v23
    %52 = vmatprep.subr.mxu0 0.0
    %53 = vmatpush1.msra.mxu0 %v24
    %54 = vmatprep.subr.mxu0 0.0
    %55 = vmatpush1.msra.mxu0 %v25
    %56 = vmatprep.subr.mxu0 0.0
    %57 = vmatpush1.msra.mxu0 %v26
    %58 = vmatprep.subr.mxu0 0.0
    %59 = vmatpush1.msra.mxu0 %v27
    %60 = vmatprep.subr.mxu0 0.0
    %61 = vmatpush1.msra.mxu0 %v28
    %62 = vmatprep.subr.mxu0 0.0
    %63 = vmatpush1.msra.mxu0 %v29
    %64 = vmatprep.subr.mxu0 0.0
    %65 = vmatpush1.msra.mxu0 %v30
    %66 = vmatprep.subr.mxu0 0.0
    %67 = vmatpush1.msra.mxu0 %v31
    %68 = vmatprep.subr.mxu0 0.0
    %69 = vmatpush1.msra.mxu0 %v32
    %70 = vmatprep.subr.mxu0 0.0
    %71 = vmatpush1.msra.mxu0 %v33
    %72 = vmatprep.subr.mxu0 0.0
    %73 = vmatpush1.msra.mxu0 %v34
    %74 = vmatprep.subr.mxu0 0.0
    %75 = vmatpush1.msra.mxu0 0.0
    %76 = vmatprep.subr.mxu0 0.0
    %77 = vmatpush1.msra.mxu0 0.0
    %78 = vmatprep.subr.mxu0 0.0
    %79 = vmatpush1.msra.mxu0 0.0
    %80 = vmatprep.subr.mxu0 0.0
    %81 = vmatpush1.msra.mxu0 0.0
    %82 = vmatprep.subr.mxu0 0.0
    %83 = vmatpush1.msra.mxu0 0.0
    %84 = vmatprep.subr.mxu0 0.0
    %85 = vmatpush1.msra.mxu0 0.0
    %86 = vmatprep.subr.mxu0 0.0
    %87 = vmatpush1.msra.mxu0 0.0
    %88 = vmatprep.subr.mxu0 0.0
    %89 = vmatpush1.msra.mxu0 0.0
    %90 = vmatprep.subr.mxu0 0.0
    %91 = vmatpush1.msra.mxu0 0.0
    %92 = vmatprep.subr.mxu0 0.0
    %93 = vmatpush1.msra.mxu0 0.0
    %94 = vmatprep.subr.mxu0 0.0
    %95 = vmatpush1.msra.mxu0 0.0
    %96 = vmatprep.subr.mxu0 0.0
    %97 = vmatpush1.msra.mxu0 0.0
    %98 = vmatprep.subr.mxu0 0.0
    %99 = vmatpush1.msra.mxu0 0.0
    %100 = vmatprep.subr.mxu0 0.0
    %101 = vmatpush1.msra.mxu0 0.0
    %102 = vmatprep.subr.mxu0 0.0
    %103 = vmatpush1.msra.mxu0 0.0
    %104 = vmatprep.subr.mxu0 0.0
    %105 = vmatpush1.msra.mxu0 0.0
    %106 = vmatprep.mubr.f32.mxu0 0.0
    %107 = vmatmul.mubr.f32.gmra.mrb[0].mxu0 %v15
    %v108 = vpop.f32.mrb[0].mxu0
    %v109 = vadd.f32 %v40, %v108
    %v110 = vpop.f32.mrb[0].mxu0
    %111 = vmatprep.mubr.f32.mxu0 0.0
    %112 = vmatmul.mubr.f32.gmra.mrb[0].mxu0 %v16
    %v113 = vpop.f32.mrb[0].mxu0
    %v114 = vadd.f32 %v40, %v113
    %v115 = vpop.f32.mrb[0].mxu0
    %116 = vmatprep.mubr.f32.mxu0 0.0
    %117 = vmatmul.mubr.f32.gmra.mrb[0].mxu0 %v17
    %v118 = vpop.f32.mrb[0].mxu0
    %v119 = vadd.f32 %v40, %v118
    %v120 = vpop.f32.mrb[0].mxu0
    %121 = vmatprep.mubr.f32.mxu0 0.0
    %122 = vmatmul.mubr.f32.gmra.mrb[0].mxu0 %v18
    %v123 = vpop.f32.mrb[0].mxu0
    %v124 = vadd.f32 %v40, %v123
    %v125 = vpop.f32.mrb[0].mxu0
    %126 = vdwg.mxu0
    %127 = vst [vmem:[#allocation2] sm:$0xff] %v109
    %128 = vst [vmem:[#allocation2 + $0x8] sm:$0xff] %v114
    %129 = vst [vmem:[#allocation2 + $0x10] sm:$0xff] %v119
    %130 = vst [vmem:[#allocation2 + $0x18] sm:$0xff] %v124
    // Predicated region
    $region14: #{patch_embed.1} parent=1 // pred_check
      _
    $region15: #{patch_embed.1} parent=1 // pred_check_branch
      %132 = sbr.rel (0) target = $region17
    $region16: #{patch_embed.1} parent=1 // pred_region
      %s134 = ssub.s32 512, 512
      %135 = vsyncadd [#allocation3], %s134
      %s136 = sshll.u32 [#allocation2], 4
      %s137 = int_to_ptr.vmem [resolvable:$true] %s136
      %142 = dma.vmem_to_hbm [thread:$0]  %s137, 512, %s3, [#allocation3], 128, 128, 8
    $region17: #{patch_embed.1} parent=1 // pred_fallthru
      _
    // Predicated region
    $region18: #{patch_embed.1} parent=1 // pred_check
      _
    $region19: #{patch_embed.1} parent=1 // pred_check_branch
      %144 = sbr.rel (0) target = $region21
    $region20: #{patch_embed.1} parent=1 // pred_region
      %145 = dma.done [#allocation3], 512
    $region21: #{patch_embed.1} parent=1 // pred_fallthru
      _
    %146 = vsyncpa [#allocation3], 1

</llo_original>
